<compile_context>
chip_gen: v7x
topology: tpu7x:2x2x1
jax: 0.10.0
libtpu: 0.0.40
codegen_flags: <defaults>
</compile_context>

<pallas_src>
import functools
import math

import jax
import jax.numpy as jnp
from jax import lax
from jax.experimental import pallas as pl
from jax.experimental.pallas import tpu as pltpu


# ----------------------------------------------------------------------------
# Lazy hardware discovery (per-core VMEM + TensorCore count).
# ----------------------------------------------------------------------------
@functools.lru_cache(maxsize=None)
def _tpu_layout():
    """(per_core_vmem_bytes, num_tensorcores), queried lazily at first call so
    the active backend -- not import time -- decides the numbers."""
    kind = ""
    try:
        kind = jax.devices()[0].device_kind.lower()
    except Exception:
        pass
    is_v7 = ("v7" in kind) or ("7x" in kind)
    cores = 2 if is_v7 else 1
    vmem = None
    try:
        info = pltpu.get_tpu_info()
        for attr in ("vmem_capacity_bytes", "vmem_bytes", "vmem_size_bytes"):
            v = getattr(info, attr, None)
            if v:
                vmem = int(v)
                break
    except Exception:
        pass
    if vmem is None:
        vmem = (64 if is_v7 else 128) * 1024 * 1024
    if is_v7:
        # get_tpu_info may report per-chip capacity (2 TCs x 64 MiB); clamp to
        # the per-TensorCore figure so tiles are guaranteed to fit.
        vmem = min(vmem, 64 * 1024 * 1024)
    return vmem, cores


def _budgets():
    vmem, cores = _tpu_layout()
    # tile_budget covers double-buffered in+out tiles AND the in-kernel f32
    # working set; the scoped compiler limit gets additional headroom.
    return int(vmem * 0.5), int(vmem * 0.75), cores


def _round_up(x, m):
    return ((x + m - 1) // m) * m


def _sublane(dtype):
    # Native sublane packing: 8 rows for 4-byte, 16 for bf16, 32 for int8/fp8.
    return max(8, 32 // jnp.dtype(dtype).itemsize)


def _row_footprint_bytes(width, io_itemsize, f32_temps=5):
    # 2x double-buffered input + 2x output tiles at the I/O dtype, plus the
    # in-kernel f32 upcast / square / scale / shift / result temporaries.
    return width * (4 * io_itemsize + 4 * f32_temps)


def _pick_row_tile(rows, row_bytes, budget, sub, cores):
    tm = budget // max(row_bytes, 1)
    tm = int(max(sub, min(tm, 4096)))
    tm -= tm % sub
    tm = min(tm, _round_up(rows, sub))
    if cores > 1 and rows >= 2 * cores * sub:
        # Keep >= 2*cores grid steps so megacore sharding feeds every core.
        tm = min(tm, max(_round_up(pl.cdiv(rows, 2 * cores), sub), sub))
    return max(tm, sub)


def _pick_lane_tile(hw, col_bytes, budget, n, cores):
    tl = budget // max(col_bytes, 1)
    tl = int(max(128, min(tl, 1 << 16)))
    tl -= tl % 128
    if cores > 1 and n < 2 * cores:
        steps = pl.cdiv(2 * cores, max(n, 1))
        if hw >= steps * 128:
            tl = min(tl, _round_up(pl.cdiv(hw, steps), 128))
    if tl >= hw:
        return hw  # full extent: the (.,128) divisibility rule does not apply
    return max(tl, 128)


# ----------------------------------------------------------------------------
# Kernels
# ----------------------------------------------------------------------------
def _ln_rows_kernel(x_ref, wb_ref, o_ref, *, c, eps):
    """channels_last, C on lanes.  x:(tm, C), wb:(2, C) = [weight; bias] (f32).
    Applies y = x*scale + shift with the rank-1 terms scale = inv (x) w and
    shift = b - mean*inv (x) w built on the (idle) MXU to trim VPU work."""
    x = x_ref[...].astype(jnp.float32)
    s1 = jnp.sum(x, axis=-1, keepdims=True)            # (tm, 1)
    s2 = jnp.sum(x * x, axis=-1, keepdims=True)        # (tm, 1)
    inv_c = 1.0 / c
    mean = s1 * inv_c
    var = jnp.maximum(s2 * inv_c - mean * mean, 0.0)
    inv = lax.rsqrt(var + eps)                          # (tm, 1)  EUP
    wb = wb_ref[...]                                    # (2, C)
    col = lax.broadcasted_iota(jnp.int32, (x.shape[0], 2), 1)
    coef_scale = jnp.where(col == 0, inv, 0.0)          # [inv, 0]
    coef_shift = jnp.where(col == 0, -(mean * inv), 1.0)  # [-mean*inv, 1]
    scale = jnp.dot(coef_scale, wb, preferred_element_type=jnp.float32)  # inv(x)w
    shift = jnp.dot(coef_shift, wb, preferred_element_type=jnp.float32)  # b - mean*inv(x)w
    o_ref[...] = (x * scale + shift).astype(o_ref.dtype)


def _ln_packed_kernel(x_ref, seg_ref, segtwb_ref, o_ref, *, c, g, eps):
    """channels_last with small C packed: G = L // C rows share one lane-row.
    x:(tm, L); seg:(L, G) 0/1 segment-sum matrix; segtwb:(G+1, L) with rows
    0..G-1 the segment-masked weights and row G the tiled bias.  Segment sums
    and broadcasts run on the otherwise-idle MXU so loads/stores stay
    lane-dense and the VPU does ~4 ops per element."""
    x = x_ref[...].astype(jnp.float32)                  # (tm, L)
    seg = seg_ref[...]                                  # (L, G)
    s1 = jnp.dot(x, seg, preferred_element_type=jnp.float32)      # (tm, G)
    s2 = jnp.dot(x * x, seg, preferred_element_type=jnp.float32)  # (tm, G)
    inv_c = 1.0 / c
    mean = s1 * inv_c
    var = jnp.maximum(s2 * inv_c - mean * mean, 0.0)
    inv = lax.rsqrt(var + eps)                          # (tm, G)
    segtw = segtwb_ref[0:g, :]                          # (G, L) masked weights
    b_row = segtwb_ref[g:g + 1, :]                      # (1, L) tiled bias
    scale = jnp.dot(inv, segtw, preferred_element_type=jnp.float32)         # inv(x)w
    mshift = jnp.dot(mean * inv, segtw, preferred_element_type=jnp.float32)  # mean*inv(x)w
    o_ref[...] = (x * scale - mshift + b_row).astype(o_ref.dtype)


def _ln_cfirst_kernel(x_ref, w_ref, b_ref, o_ref, *, c, eps):
    """channels_first, no transposes: C on sublanes, H*W on lanes.
    x:(C, TL) (leading N squeezed by the BlockSpec), w/b:(C, 1)."""
    x = x_ref[...].astype(jnp.float32)                  # (C, TL)
    s1 = jnp.sum(x, axis=0, keepdims=True)              # (1, TL)
    s2 = jnp.sum(x * x, axis=0, keepdims=True)          # (1, TL)
    inv_c = 1.0 / c
    mean = s1 * inv_c
    var = jnp.maximum(s2 * inv_c - mean * mean, 0.0)
    inv = lax.rsqrt(var + eps)
    y = (x - mean) * inv * w_ref[...] + b_ref[...]      # (C,1) broadcasts on lanes
    o_ref[...] = y.astype(o_ref.dtype)


# ----------------------------------------------------------------------------
# Wrappers
# ----------------------------------------------------------------------------
def _ln_rows_plain(x2d, wb, eps):
    rows, C = x2d.shape
    budget, vmem_limit, cores = _budgets()
    sub = _sublane(x2d.dtype)
    tm = _pick_row_tile(rows, _row_footprint_bytes(C, x2d.dtype.itemsize),
                        budget, sub, cores)
    grid = (pl.cdiv(rows, tm),)
    return pl.pallas_call(
        functools.partial(_ln_rows_kernel, c=float(C), eps=float(eps)),
        out_shape=jax.ShapeDtypeStruct((rows, C), x2d.dtype),
        grid_spec=pltpu.PrefetchScalarGridSpec(
            num_scalar_prefetch=0,
            grid=grid,
            in_specs=[
                pl.BlockSpec((tm, C), lambda i: (i, 0)),
                pl.BlockSpec((2, C), lambda i: (0, 0)),
            ],
            out_specs=pl.BlockSpec((tm, C), lambda i: (i, 0)),
        ),
        compiler_params=pltpu.CompilerParams(
            dimension_semantics=("parallel",),
            vmem_limit_bytes=vmem_limit),
    )(x2d, wb)


def _ln_rows_packed(x2d, w1d, b1d, eps, L, G):
    rows, C = x2d.shape
    rows_p = rows // G
    xp = x2d.reshape(rows_p, L)                         # free, contiguous reshape

    lane = jnp.arange(L, dtype=jnp.int32)
    grp = jnp.arange(G, dtype=jnp.int32)
    seg = (lane[:, None] // C == grp[None, :]).astype(jnp.float32)   # (L, G)
    w_tiled = jnp.tile(w1d, G)                                       # (L,)
    b_tiled = jnp.tile(b1d, G)                                       # (L,)
    segtw = jnp.transpose(seg) * w_tiled[None, :]                    # (G, L)
    segtwb = jnp.concatenate([segtw, b_tiled[None, :]], axis=0)      # (G+1, L)

    budget, vmem_limit, cores = _budgets()
    sub = _sublane(x2d.dtype)
    tm = _pick_row_tile(rows_p, _row_footprint_bytes(L, x2d.dtype.itemsize),
                        budget, sub, cores)
    grid = (pl.cdiv(rows_p, tm),)
    out = pl.pallas_call(
        functools.partial(_ln_packed_kernel, c=float(C), g=int(G), eps=float(eps)),
        out_shape=jax.ShapeDtypeStruct((rows_p, L), x2d.dtype),
        grid_spec=pltpu.PrefetchScalarGridSpec(
            num_scalar_prefetch=0,
            grid=grid,
            in_specs=[
                pl.BlockSpec((tm, L), lambda i: (i, 0)),
                pl.BlockSpec((L, G), lambda i: (0, 0)),
                pl.BlockSpec((G + 1, L), lambda i: (0, 0)),
            ],
            out_specs=pl.BlockSpec((tm, L), lambda i: (i, 0)),
        ),
        compiler_params=pltpu.CompilerParams(
            dimension_semantics=("parallel",),
            vmem_limit_bytes=vmem_limit),
    )(xp, seg, segtwb)
    return out.reshape(rows, C)


def _layernorm_lastdim(x2d, weight, bias, eps):
    """LayerNorm over the last axis of a (rows, C) array."""
    rows, C = x2d.shape
    w1d = weight.astype(jnp.float32).reshape(-1)
    b1d = bias.astype(jnp.float32).reshape(-1)

    if C % 128 != 0:
        L = (C * 128) // math.gcd(C, 128)               # lcm(C, 128)
        G = L // C
        # Lane-dense packing is the biggest single lever for small / odd C.
        # TODO(synk): rows % G != 0 falls back to the lane-sparse plain path;
        # a packed-bulk + remainder split would cost an extra full-output copy.
        if L <= 2048 and rows >= G and rows % G == 0:
            return _ln_rows_packed(x2d, w1d, b1d, eps, L, G)
    wb = jnp.stack([w1d, b1d], axis=0)                  # (2, C) f32
    return _ln_rows_plain(x2d, wb, eps)


def _layernorm_channels_first(x3, weight, bias, eps):
    """LayerNorm over axis 1 of a (N, C, HW) array (no transposes)."""
    N, C, HW = x3.shape
    wr = weight.astype(jnp.float32).reshape(C, 1)
    br = bias.astype(jnp.float32).reshape(C, 1)
    budget, vmem_limit, cores = _budgets()
    col_bytes = C * (4 * x3.dtype.itemsize + 16)        # io tiles + f32 temps
    tl = _pick_lane_tile(HW, col_bytes, budget, N, cores)
    grid = (N, pl.cdiv(HW, tl))
    # TODO(synk): for C smaller than one sublane group (< 8 f32 / 16 bf16) some
    # sublane bandwidth is wasted; folding several images into the sublane axis
    # would fix it but is not needed for ConvNeXtV2's channel counts.
    return pl.pallas_call(
        functools.partial(_ln_cfirst_kernel, c=float(C), eps=float(eps)),
        out_shape=jax.ShapeDtypeStruct((N, C, HW), x3.dtype),
        grid_spec=pltpu.PrefetchScalarGridSpec(
            num_scalar_prefetch=0,
            grid=grid,
            in_specs=[
                pl.BlockSpec((None, C, tl), lambda n, j: (n, 0, j)),
                pl.BlockSpec((C, 1), lambda n, j: (0, 0)),
                pl.BlockSpec((C, 1), lambda n, j: (0, 0)),
            ],
            out_specs=pl.BlockSpec((None, C, tl), lambda n, j: (n, 0, j)),
        ),
        compiler_params=pltpu.CompilerParams(
            dimension_semantics=("parallel", "parallel"),
            vmem_limit_bytes=vmem_limit),
    )(x3, wr, br)


class PallasLayerNorm:
    """Mirror of the PyTorch LayerNorm module (ConvNeXtV2)."""

    def __init__(self, normalized_shape, eps=1e-06, data_format="channels_last"):
        if data_format not in ("channels_last", "channels_first"):
            raise NotImplementedError
        self.C = int(normalized_shape)
        self.eps = float(eps)
        self.data_format = data_format
        # Deterministic init, identical to the nn.Module __init__.
        self.weight = jnp.ones((self.C,), dtype=jnp.float32)
        self.bias = jnp.zeros((self.C,), dtype=jnp.float32)

    def __call__(self, x):
        if self.data_format == "channels_last":
            assert x.shape[-1] == self.C
            lead = x.shape[:-1]
            y2d = _layernorm_lastdim(
                x.reshape(-1, self.C), self.weight, self.bias, self.eps)
            return y2d.reshape(*lead, self.C)
        else:
            N, C, H, W = x.shape
            assert C == self.C
            y3 = _layernorm_channels_first(
                x.reshape(N, C, H * W), self.weight, self.bias, self.eps)
            return y3.reshape(N, C, H, W)


# ----------------------------------------------------------------------------
# Pure-JAX references (match the PyTorch forward exactly)
# ----------------------------------------------------------------------------
def _reference_channels_first(x, w, b, eps):
    u = x.mean(axis=1, keepdims=True)
    s = ((x - u) ** 2).mean(axis=1, keepdims=True)
    xn = (x - u) / jnp.sqrt(s + eps)
    return w[None, :, None, None] * xn + b[None, :, None, None]


def _reference_channels_last(x, w, b, eps):
    u = x.mean(axis=-1, keepdims=True)
    s = ((x - u) ** 2).mean(axis=-1, keepdims=True)
    xn = (x - u) / jnp.sqrt(s + eps)
    return xn * w + b


if __name__ == "__main__":
    key = jax.random.PRNGKey(0)
    k1, k2, k3, kw1, kb1, kw2, kb2, kw3, kb3 = jax.random.split(key, 9)

    N, C, H, W = 2, 4, 16, 16

    # channels_first path (NCHW, like conv feature maps) -> sublane-reduce kernel
    x_cf = jax.random.normal(k1, (N, C, H, W), dtype=jnp.float32)
    ln_cf = PallasLayerNorm(C, eps=1e-6, data_format="channels_first")
    ln_cf.weight = jax.random.normal(kw1, (C,), dtype=jnp.float32)
    ln_cf.bias = jax.random.normal(kb1, (C,), dtype=jnp.float32)
    y_cf = jax.block_until_ready(ln_cf(x_cf))
    ref_cf = _reference_channels_first(x_cf, ln_cf.weight, ln_cf.bias, ln_cf.eps)
    assert y_cf.shape == (N, C, H, W)
    assert jnp.allclose(y_cf, ref_cf, atol=1e-4, rtol=1e-4)

    # channels_last path (NHWC, small C) -> lane-dense packed (MXU segment-sum) kernel
    x_cl = jax.random.normal(k2, (N, H, W, C), dtype=jnp.float32)
    ln_cl = PallasLayerNorm(C, eps=1e-6, data_format="channels_last")
    ln_cl.weight = jax.random.normal(kw2, (C,), dtype=jnp.float32)
    ln_cl.bias = jax.random.normal(kb2, (C,), dtype=jnp.float32)
    y_cl = jax.block_until_ready(ln_cl(x_cl))
    ref_cl = _reference_channels_last(x_cl, ln_cl.weight, ln_cl.bias, ln_cl.eps)
    assert y_cl.shape == (N, H, W, C)
    assert jnp.allclose(y_cl, ref_cl, atol=1e-4, rtol=1e-4)

    # channels_last path with a 128-multiple C -> plain lane-dense kernel
    C2 = 128
    x_cl2 = jax.random.normal(k3, (N, 8, 8, C2), dtype=jnp.float32)
    ln_cl2 = PallasLayerNorm(C2, eps=1e-6, data_format="channels_last")
    ln_cl2.weight = jax.random.normal(kw3, (C2,), dtype=jnp.float32)
    ln_cl2.bias = jax.random.normal(kb3, (C2,), dtype=jnp.float32)
    y_cl2 = jax.block_until_ready(ln_cl2(x_cl2))
    ref_cl2 = _reference_channels_last(x_cl2, ln_cl2.weight, ln_cl2.bias, ln_cl2.eps)
    assert jnp.allclose(y_cl2, ref_cl2, atol=1e-4, rtol=1e-4)

    print("KERNEL_OK")
</pallas_src>

<mosaic_0001>
module attributes {stable_mosaic.version = 11 : i64} {
  func.func @_ln_cfirst_kernel(%arg0: i32, %arg1: i32, %arg2: memref<1x4x256xf32, #tpu.memory_space<vmem>>, %arg3: memref<4x1xf32, #tpu.memory_space<vmem>>, %arg4: memref<4x1xf32, #tpu.memory_space<vmem>>, %arg5: memref<1x4x256xf32, #tpu.memory_space<vmem>>) attributes {dimension_semantics = [#tpu.dimension_semantics<parallel>, #tpu.dimension_semantics<parallel>], iteration_bounds = array<i64: 2, 1>, scalar_prefetch = 0 : i64, scratch_operands = 0 : i64, tpu.core_type = #tpu.core_type<tc>, window_params = [{transform_indices = @transform_0, window_bounds = array<i64: 1, 4, 256>}, {pipeline_mode = #tpu.pipeline_mode<synchronous>, transform_indices = @transform_1, window_bounds = array<i64: 4, 1>}, {pipeline_mode = #tpu.pipeline_mode<synchronous>, transform_indices = @transform_2, window_bounds = array<i64: 4, 1>}, {transform_indices = @transform_3, window_bounds = array<i64: 1, 4, 256>}]} {
    %c0 = arith.constant 0 : index
    %c0_0 = arith.constant 0 : index
    %c0_1 = arith.constant 0 : index
    %0 = vector.load %arg2[%c0, %c0_0, %c0_1] : memref<1x4x256xf32, #tpu.memory_space<vmem>>, vector<1x4x256xf32>
    %1 = vector.shape_cast %0 : vector<1x4x256xf32> to vector<4x256xf32>
    %cst = arith.constant dense<0.000000e+00> : vector<256xf32>
    %2 = vector.multi_reduction <add>, %1, %cst [0] : vector<4x256xf32> to vector<256xf32>
    %3 = vector.shape_cast %2 : vector<256xf32> to vector<1x256xf32>
    %4 = arith.mulf %1, %1 : vector<4x256xf32>
    %cst_2 = arith.constant dense<0.000000e+00> : vector<256xf32>
    %5 = vector.multi_reduction <add>, %4, %cst_2 [0] : vector<4x256xf32> to vector<256xf32>
    %6 = vector.shape_cast %5 : vector<256xf32> to vector<1x256xf32>
    %cst_3 = arith.constant 2.500000e-01 : f32
    %7 = vector.broadcast %cst_3 : f32 to vector<1x256xf32>
    %8 = arith.mulf %3, %7 : vector<1x256xf32>
    %cst_4 = arith.constant 2.500000e-01 : f32
    %9 = vector.broadcast %cst_4 : f32 to vector<1x256xf32>
    %10 = arith.mulf %6, %9 : vector<1x256xf32>
    %11 = arith.mulf %8, %8 : vector<1x256xf32>
    %12 = arith.subf %10, %11 : vector<1x256xf32>
    %cst_5 = arith.constant 0.000000e+00 : f32
    %13 = vector.broadcast %cst_5 : f32 to vector<1x256xf32>
    %14 = arith.maximumf %12, %13 : vector<1x256xf32>
    %cst_6 = arith.constant 9.99999997E-7 : f32
    %15 = vector.broadcast %cst_6 : f32 to vector<1x256xf32>
    %16 = arith.addf %14, %15 : vector<1x256xf32>
    %17 = math.rsqrt %16 : vector<1x256xf32>
    %18 = vector.broadcast %8 : vector<1x256xf32> to vector<4x256xf32>
    %19 = arith.subf %1, %18 : vector<4x256xf32>
    %20 = vector.broadcast %17 : vector<1x256xf32> to vector<4x256xf32>
    %21 = arith.mulf %19, %20 : vector<4x256xf32>
    %c0_7 = arith.constant 0 : index
    %c0_8 = arith.constant 0 : index
    %22 = vector.load %arg3[%c0_7, %c0_8] : memref<4x1xf32, #tpu.memory_space<vmem>>, vector<4x1xf32>
    %23 = vector.broadcast %22 : vector<4x1xf32> to vector<4x256xf32>
    %24 = arith.mulf %21, %23 : vector<4x256xf32>
    %c0_9 = arith.constant 0 : index
    %c0_10 = arith.constant 0 : index
    %25 = vector.load %arg4[%c0_9, %c0_10] : memref<4x1xf32, #tpu.memory_space<vmem>>, vector<4x1xf32>
    %26 = vector.broadcast %25 : vector<4x1xf32> to vector<4x256xf32>
    %27 = arith.addf %24, %26 : vector<4x256xf32>
    %c0_11 = arith.constant 0 : index
    %c0_12 = arith.constant 0 : index
    %c0_13 = arith.constant 0 : index
    %28 = vector.load %arg5[%c0_11, %c0_12, %c0_13] : memref<1x4x256xf32, #tpu.memory_space<vmem>>, vector<1x4x256xf32>
    %29 = vector.shape_cast %28 : vector<1x4x256xf32> to vector<4x256xf32>
    %30 = vector.shape_cast %27 : vector<4x256xf32> to vector<1x4x256xf32>
    tpu.vector_store %arg5[%c0_11, %c0_12, %c0_13], %30 {strides = array<i32>} : memref<1x4x256xf32, #tpu.memory_space<vmem>>, vector<1x4x256xf32>,
    return
  }
  func.func @transform_0(%arg0: i32, %arg1: i32) -> (i32, i32, i32) {
    %c0_i32 = arith.constant 0 : i32
    %c0_i32_0 = arith.constant 0 : i32
    return %arg0, %c0_i32, %arg1 : i32, i32, i32
  }
  func.func @transform_1(%arg0: i32, %arg1: i32) -> (i32, i32) {
    %c0_i32 = arith.constant 0 : i32
    %c0_i32_0 = arith.constant 0 : i32
    %c0_i32_1 = arith.constant 0 : i32
    return %c0_i32, %c0_i32_0 : i32, i32
  }
  func.func @transform_2(%arg0: i32, %arg1: i32) -> (i32, i32) {
    %c0_i32 = arith.constant 0 : i32
    %c0_i32_0 = arith.constant 0 : i32
    %c0_i32_1 = arith.constant 0 : i32
    return %c0_i32, %c0_i32_0 : i32, i32
  }
  func.func @transform_3(%arg0: i32, %arg1: i32) -> (i32, i32, i32) {
    %c0_i32 = arith.constant 0 : i32
    %c0_i32_0 = arith.constant 0 : i32
    return %arg0, %c0_i32, %arg1 : i32, i32, i32
  }
}

</mosaic_0001>

<llo_original>
// kernel: tpu_custom_call.1
$region0: #{tpu_custom_call.1}
  #allocation0 [shape = 'u32[]', space=smem, size = 0x4, offset = 0x4, fixed_abs, tag = 'smem constant byte address 0x4 - core index']
  #allocation1 [shape = 'u32[144,128]{1,0:T(1,128)}', space=vmem, size = 0x12000, scoped, tag = 'internal scratch']
  %s0 = inlined_call_operand.hbm [shape: f32[2,4,256], index: 0, kind: input, shape index: {}]
  %s1 = inlined_call_operand.hbm [shape: f32[4,1], index: 1, kind: input, shape index: {}]
  %s2 = inlined_call_operand.hbm [shape: f32[4,1], index: 2, kind: input, shape index: {}]
  %s3 = inlined_call_operand.hbm [shape: f32[2,4,256], index: 3, kind: output, shape index: {}]
  %s4 = sld [smem:[#allocation0]]
  $region57: #{tpu_custom_call.1} parent=0
    _
  %s6 = ssub.s32 1, %s4
  %s7 = scalar_select 0, %s6, %s4
  $region1: #{tpu_custom_call.1} parent=0
    #allocation2 [shape = 'u8[8192]{0}', space=vmem, size = 0x2000, scoped, tag = 'input window, operand 0']
    #allocation3 [shape = 's32[2]{0}', space=sflag, size = 0x8, scoped, tag = 'scoped memory for tpu_custom_call.1']
    #allocation4 [shape = 's32[2]{0}', space=sflag, size = 0x8, scoped, tag = 'scoped memory for tpu_custom_call.1']
    #allocation5 [shape = 'u8[2048]{0}', space=vmem, size = 0x800, scoped, tag = 'input window, operand 1, single buffered']
    #allocation6 [shape = 's32[1]{0}', space=sflag, size = 0x4, scoped, tag = 'scoped memory for tpu_custom_call.1']
    #allocation7 [shape = 'u8[2048]{0}', space=vmem, size = 0x800, scoped, tag = 'input window, operand 2, single buffered']
    #allocation8 [shape = 'u8[8192]{0}', space=vmem, size = 0x2000, scoped, tag = 'output window, operand 0']
    %8 = vsyncpa [#allocation3], 0
    %s9 = scalar_lea.sflag [#allocation3], 1
    %10 = vsyncpa %s9, 0
    %11 = vsyncpa [#allocation6], 0
    %12 = vsyncpa [#allocation4], 0
    %s13 = scalar_lea.sflag [#allocation4], 1
    %14 = vsyncpa %s13, 0
    loop: start=0, step=1, limit=4
    $region2: #{tpu_custom_call.1} parent=1 // loop_pre_header
      _
    $region3: #{tpu_custom_call.1} parent=1 // loop_header
      %s16 = sphi 0, %s20
      %p17 = scmp.ge.s32.totalorder %s16, 4
      %s23 = sphi 0, %s35
      %s24 = sphi 0, %s31
      %s25 = sphi 0, %s23
      %s26 = sphi 0, %s24
      %s27 = sphi 0, %s25
      %s28 = sphi 0, %s26
      %s40 = sphi 0, %s42
      %s43 = sphi 0, %s40
      %s44 = sphi 0, %s43
      %s60 = sphi 0, %s44
      %s64 = sphi 0, %s64
      %s66 = sphi 0, %s64
      %s67 = sphi 0, %s66
      %s81 = sphi 0, %s67
      %s85 = sphi 0, %s85
      %s87 = sphi 0, %s85
      %s88 = sphi 0, %s87
      %s102 = sphi 0, %s88
      %s110 = sphi 0, %s112
      %s113 = sphi 0, %s110
      %s114 = sphi 0, %s113
      %s130 = sphi 0, %s114
    $region4: #{tpu_custom_call.1} parent=1 // loop_header_branch
      %19 = sbr.rel (%p17) target = $region8
    $region5: #{tpu_custom_call.1} parent=1 // loop_body
      %s21 = ssub.s32 %s16, 1
      %s22 = ssub.s32 %s16, 2
      %s29 = sadd.s32 1, %s24
      %p30 = scmp.ge.s32.totalorder %s29, 1
      %s31 = scalar_select %p30, 0, %s29
      %s32 = sadd.s32 1, %s23
      %s33 = scalar_select %p30, %s32, %s23
      %p34 = scmp.ge.s32.totalorder %s33, 2
      %s35 = scalar_select %p34, 0, %s33
      %s36 = ssub.s32 %s23, %s35
      %s37 = ssub.s32 %s24, %s31
      %s38 = sor.u32 %s36, %s37
      %p39 = scmp.eq.s32.totalorder %s38, 0
      %s41 = sadd.s32 %s40, 1
      %s42 = scalar_select %p39, %s40, %s41
      %p45 = pneg %p39
      %p46 = scmp.eq.s32.totalorder %s16, 1
      %p47 = por %p45, %p46
      %p48 = scmp.ne.s32.totalorder %s40, %s43
      %p49 = scmp.eq.s32.totalorder %s16, 0
      %p50 = por %p48, %p49
      %p51 = scmp.ne.s32.totalorder %s40, %s43
      %p52 = scmp.eq.s32.totalorder %s21, 1
      %p53 = por %p51, %p52
      %p54 = scmp.ne.s32.totalorder %s43, %s44
      %p55 = scmp.eq.s32.totalorder %s21, 0
      %p56 = por %p54, %p55
      %p57 = scmp.ne.s32.totalorder %s43, %s44
      %p58 = scmp.eq.s32.totalorder %s22, 1
      %p59 = por %p57, %p58
      %p61 = scmp.ne.s32.totalorder %s44, %s60
      %p62 = scmp.eq.s32.totalorder %s22, 0
      %p63 = por %p61, %p62
      %s65 = sadd.s32 %s64, 1
      %p68 = scmp.eq.s32.totalorder %s16, 1
      %p69 = scmp.ne.s32.totalorder %s64, %s66
      %p70 = scmp.eq.s32.totalorder %s16, 0
      %p71 = por %p69, %p70
      %p72 = scmp.ne.s32.totalorder %s64, %s66
      %p73 = scmp.eq.s32.totalorder %s21, 1
      %p74 = por %p72, %p73
      %p75 = scmp.ne.s32.totalorder %s66, %s67
      %p76 = scmp.eq.s32.totalorder %s21, 0
      %p77 = por %p75, %p76
      %p78 = scmp.ne.s32.totalorder %s66, %s67
      %p79 = scmp.eq.s32.totalorder %s22, 1
      %p80 = por %p78, %p79
      %p82 = scmp.ne.s32.totalorder %s67, %s81
      %p83 = scmp.eq.s32.totalorder %s22, 0
      %p84 = por %p82, %p83
      %s86 = sadd.s32 %s85, 1
      %p89 = scmp.eq.s32.totalorder %s16, 1
      %p90 = scmp.ne.s32.totalorder %s85, %s87
      %p91 = scmp.eq.s32.totalorder %s16, 0
      %p92 = por %p90, %p91
      %p93 = scmp.ne.s32.totalorder %s85, %s87
      %p94 = scmp.eq.s32.totalorder %s21, 1
      %p95 = por %p93, %p94
      %p96 = scmp.ne.s32.totalorder %s87, %s88
      %p97 = scmp.eq.s32.totalorder %s21, 0
      %p98 = por %p96, %p97
      %p99 = scmp.ne.s32.totalorder %s87, %s88
      %p100 = scmp.eq.s32.totalorder %s22, 1
      %p101 = por %p99, %p100
      %p103 = scmp.ne.s32.totalorder %s88, %s102
      %p104 = scmp.eq.s32.totalorder %s22, 0
      %p105 = por %p103, %p104
      %s106 = ssub.s32 %s23, %s35
      %s107 = ssub.s32 %s24, %s31
      %s108 = sor.u32 %s106, %s107
      %p109 = scmp.eq.s32.totalorder %s108, 0
      %s111 = sadd.s32 %s110, 1
      %s112 = scalar_select %p109, %s110, %s111
      %p115 = pneg %p109
      %p116 = scmp.eq.s32.totalorder %s16, 1
      %p117 = por %p115, %p116
      %p118 = scmp.ne.s32.totalorder %s110, %s113
      %p119 = scmp.eq.s32.totalorder %s16, 0
      %p120 = por %p118, %p119
      %p121 = scmp.ne.s32.totalorder %s110, %s113
      %p122 = scmp.eq.s32.totalorder %s21, 1
      %p123 = por %p121, %p122
      %p124 = scmp.ne.s32.totalorder %s113, %s114
      %p125 = scmp.eq.s32.totalorder %s21, 0
      %p126 = por %p124, %p125
      %p127 = scmp.ne.s32.totalorder %s113, %s114
      %p128 = scmp.eq.s32.totalorder %s22, 1
      %p129 = por %p127, %p128
      %p131 = scmp.ne.s32.totalorder %s114, %s130
      %p132 = scmp.eq.s32.totalorder %s22, 0
      %p133 = por %p131, %p132
      %p134 = scmp.le.s32.totalorder 1, %s16
      %p135 = scmp.lt.s32.totalorder %s16, 3
      %p136 = pnand %p134, %p135
      %p137 = pneg %p136
      // Predicated region
      $region9: #{tpu_custom_call.1} parent=5 // pred_check
        _
      $region10: #{tpu_custom_call.1} parent=5 // pred_check_branch
        %139 = sbr.rel (%p136) target = $region12
      $region11: #{tpu_custom_call.1} parent=5 // pred_region
        %s140 = ssub.s32 %s16, 1
        // Predicated region
        $region13: #{tpu_custom_call.1} parent=11 // pred_check
          %p141 = pneg %p77
        $region14: #{tpu_custom_call.1} parent=11 // pred_check_branch
          %143 = sbr.rel (%p141) target = $region16
        $region15: #{tpu_custom_call.1} parent=11 // pred_region
          %s145 = ssub.s32 64, 64
          %146 = vsyncadd [#allocation6], %s145
          %s148 = sshll.u32 [#allocation5], 4
          %s149 = int_to_ptr.vmem [resolvable:$true] %s148
          %151 = dma.hbm_to_vmem [thread:$0]  %s1, 64, %s149, [#allocation6]
        $region16: #{tpu_custom_call.1} parent=11 // pred_fallthru
          _
        // Predicated region
        $region17: #{tpu_custom_call.1} parent=11 // pred_check
          %p152 = pneg %p98
        $region18: #{tpu_custom_call.1} parent=11 // pred_check_branch
          %154 = sbr.rel (%p152) target = $region20
        $region19: #{tpu_custom_call.1} parent=11 // pred_region
          %s156 = ssub.s32 64, 64
          %157 = vsyncadd [#allocation6], %s156
          %s159 = sshll.u32 [#allocation7], 4
          %s160 = int_to_ptr.vmem [resolvable:$true] %s159
          %162 = dma.hbm_to_vmem [thread:$0]  %s2, 64, %s160, [#allocation6]
        $region20: #{tpu_custom_call.1} parent=11 // pred_fallthru
          _
      $region12: #{tpu_custom_call.1} parent=5 // pred_fallthru
        _
      %p163 = scmp.lt.s32.totalorder %s16, 2
      // Predicated region
      $region21: #{tpu_custom_call.1} parent=5 // pred_check
        %p164 = pneg %p163
      $region22: #{tpu_custom_call.1} parent=5 // pred_check_branch
        %166 = sbr.rel (%p164) target = $region24
      $region23: #{tpu_custom_call.1} parent=5 // pred_region
        // Predicated region
        $region25: #{tpu_custom_call.1} parent=23 // pred_check
          %p167 = pneg %p50
        $region26: #{tpu_custom_call.1} parent=23 // pred_check_branch
          %169 = sbr.rel (%p167) target = $region28
        $region27: #{tpu_custom_call.1} parent=23 // pred_region
          %s170 = sand.u32 %s40, 1
          %s171 = scalar_lea.sflag [#allocation3], %s170
          %s172 = sand.u32 %s40, 1
          %s173 = smul.addr %s172, 8
          %s174 = scalar_lea.vmem [#allocation2], %s173
          %s175 = smul.u32 2, %s24
          %s177 = ssub.s32 128, 128
          %178 = vsyncadd %s171, %s177
          %s179 = smul.addr %s23, 2
          %s180 = sadd.s32 %s175, %s179
          %s181 = smul.addr %s180, 64
          %s182 = scalar_lea.hbm %s0, %s181
          %s184 = sshll.u32 %s174, 4
          %s185 = int_to_ptr.vmem [resolvable:$true] %s184
          %187 = dma.hbm_to_vmem [thread:$0]  %s182, 128, %s185, %s171
        $region28: #{tpu_custom_call.1} parent=23 // pred_fallthru
          _
      $region24: #{tpu_custom_call.1} parent=5 // pred_fallthru
        _
      %p188 = scmp.le.s32.totalorder 1, %s16
      %p189 = scmp.lt.s32.totalorder %s16, 3
      %p190 = pnand %p188, %p189
      %p191 = pneg %p190
      // Predicated region
      $region29: #{tpu_custom_call.1} parent=5 // pred_check
        _
      $region30: #{tpu_custom_call.1} parent=5 // pred_check_branch
        %193 = sbr.rel (%p190) target = $region32
      $region31: #{tpu_custom_call.1} parent=5 // pred_region
        %s194 = ssub.s32 %s16, 1
        %s195 = sand.u32 %s43, 1
        %s196 = scalar_lea.sflag [#allocation3], %s195
        %s197 = sand.u32 %s43, 1
        %s198 = smul.addr %s197, 8
        %s199 = scalar_lea.vmem [#allocation2], %s198
        // Predicated region
        $region33: #{tpu_custom_call.1} parent=31 // pred_check
          %p200 = pneg %p56
        $region34: #{tpu_custom_call.1} parent=31 // pred_check_branch
          %202 = sbr.rel (%p200) target = $region36
        $region35: #{tpu_custom_call.1} parent=31 // pred_region
          %203 = dma.done %s196, 128
        $region36: #{tpu_custom_call.1} parent=31 // pred_fallthru
          _
        // Predicated region
        $region37: #{tpu_custom_call.1} parent=31 // pred_check
          %p204 = pneg %p77
        $region38: #{tpu_custom_call.1} parent=31 // pred_check_branch
          %206 = sbr.rel (%p204) target = $region40
        $region39: #{tpu_custom_call.1} parent=31 // pred_region
          %207 = dma.done [#allocation6], 64
        $region40: #{tpu_custom_call.1} parent=31 // pred_fallthru
          _
        // Predicated region
        $region41: #{tpu_custom_call.1} parent=31 // pred_check
          %p208 = pneg %p98
        $region42: #{tpu_custom_call.1} parent=31 // pred_check_branch
          %210 = sbr.rel (%p208) target = $region44
        $region43: #{tpu_custom_call.1} parent=31 // pred_region
          %211 = dma.done [#allocation6], 64
        $region44: #{tpu_custom_call.1} parent=31 // pred_fallthru
          _
        %s212 = sand.u32 %s43, 1
        %s213 = scalar_lea.sflag [#allocation3], %s212
        %s214 = sand.u32 %s43, 1
        %s215 = smul.addr %s214, 8
        %s216 = scalar_lea.vmem [#allocation2], %s215
        %p217 = pneg %p56
        %p218 = pneg %p53
        %p219 = pneg %p77
        %p220 = pneg %p74
        %p221 = pneg %p98
        %p222 = pneg %p95
        %p223 = pneg %p126
        %p224 = pneg %p123
        %s225 = sand.u32 %s113, 1
        %s226 = scalar_lea.sflag [#allocation4], %s225
        %s227 = sand.u32 %s113, 1
        %s228 = smul.addr %s227, 8
        %s229 = scalar_lea.vmem [#allocation8], %s228
        %s230 = smul.u32 2, %s26
        %s231 = smul.u32 2, %s26
        %v232 = vld [vmem:[%s199] sm:$0xff]
        %v234 = vcombine.high %v232, %v232
        %vm236 = vcmask 1043456
        %v237 = vsel %vm236, %v232, 0.0
        %v238 = vrot.slane %v237, 4
        %v239 = vadd.f32 %v237, %v238
        %v240 = vrot.slane %v239, 2
        %v241 = vadd.f32 %v239, %v240
        %v242 = vrot.slane %v241, 1
        %v243 = vadd.f32 %v241, %v242
        %v244 = vsel %vm236, %v234, 0.0
        %v245 = vrot.slane %v244, 4
        %v246 = vadd.f32 %v244, %v245
        %v247 = vrot.slane %v246, 2
        %v248 = vadd.f32 %v246, %v247
        %v249 = vrot.slane %v248, 1
        %v250 = vadd.f32 %v248, %v249
        %v251 = vmul.f32 %v232, %v232
        %v253 = vcombine.high %v251, %v251
        %v255 = vsel %vm236, %v251, 0.0
        %v256 = vrot.slane %v255, 4
        %v257 = vadd.f32 %v255, %v256
        %v258 = vrot.slane %v257, 2
        %v259 = vadd.f32 %v257, %v258
        %v260 = vrot.slane %v259, 1
        %v261 = vadd.f32 %v259, %v260
        %v262 = vsel %vm236, %v253, 0.0
        %v263 = vrot.slane %v262, 4
        %v264 = vadd.f32 %v262, %v263
        %v265 = vrot.slane %v264, 2
        %v266 = vadd.f32 %v264, %v265
        %v267 = vrot.slane %v266, 1
        %v268 = vadd.f32 %v266, %v267
        %v269 = vmul.f32 %v243, 0.25
        %v270 = vmul.f32 %v250, 0.25
        %v271 = vmul.f32 %v261, 0.25
        %v272 = vmul.f32 %v268, 0.25
        %v273 = vmul.f32 %v269, %v269
        %v274 = vmul.f32 %v270, %v270
        %v275 = vsub.f32 %v271, %v273
        %v276 = vsub.f32 %v272, %v274
        %v277 = vmax.f32 %v275, 0.0
        %v278 = vmax.f32 %v276, 0.0
        %v279 = vadd.f32 %v277, 1e-06
        %v280 = vadd.f32 %v278, 1e-06
        %v281 = vrsqrt.pop %v279
        %v282 = vrsqrt.pop %v280
        %v285 = vcombine.low %v269, %v270
        %v287 = vsub.f32 %v232, %v285
        %v290 = vcombine.low %v281, %v282
        %v292 = vmul.f32 %v287, %v290
        %v293 = vld [vmem:[#allocation5] sm:$0xf]
        %295 = vset.pattern.permute.xlu0 0
        %296 = vperm.xlu0 %295, %v293
        %v297 = vpop.permute.xlu0 %296
        %v299 = vunpack.c.l.s4 839922192
        %v300 = vunpack.c.0.s8 %v299
        %v301 = vlaneseq
        %v302 = vshrl.u32 %v301, 7
        %v303 = vsub.s32 %v300, %v302
        %v304 = vrot.slane %v297, %v303
        %v306 = vmul.f32 %v292, %v304
        %v307 = vld [vmem:[#allocation7] sm:$0xf]
        %309 = vset.pattern.permute.xlu0 0
        %310 = vperm.xlu0 %309, %v307
        %v311 = vpop.permute.xlu0 %310
        %v313 = vunpack.c.l.s4 839922192
        %v314 = vunpack.c.0.s8 %v313
        %v315 = vlaneseq
        %v316 = vshrl.u32 %v315, 7
        %v317 = vsub.s32 %v314, %v316
        %v318 = vrot.slane %v311, %v317
        %v320 = vadd.f32 %v306, %v318
        %321 = vst [vmem:[%s229] sm:$0xff] %v320
        %s322 = sand.u32 %s113, 1
        %s323 = scalar_lea.sflag [#allocation4], %s322
        %s324 = sand.u32 %s113, 1
        %s325 = smul.addr %s324, 8
        %s326 = scalar_lea.vmem [#allocation8], %s325
        // Predicated region
        $region45: #{tpu_custom_call.1} parent=31 // pred_check
          %p327 = pneg %p123
        $region46: #{tpu_custom_call.1} parent=31 // pred_check_branch
          %329 = sbr.rel (%p327) target = $region48
        $region47: #{tpu_custom_call.1} parent=31 // pred_region
          %s330 = smul.u32 2, %s26
          %s332 = ssub.s32 128, 128
          %333 = vsyncadd %s323, %s332
          %s334 = smul.addr %s25, 2
          %s335 = sadd.s32 %s330, %s334
          %s336 = smul.addr %s335, 64
          %s337 = scalar_lea.hbm %s3, %s336
          %s339 = sshll.u32 %s326, 4
          %s340 = int_to_ptr.vmem [resolvable:$true] %s339
          %342 = dma.vmem_to_hbm [thread:$0]  %s340, 128, %s337, %s323
        $region48: #{tpu_custom_call.1} parent=31 // pred_fallthru
          _
      $region32: #{tpu_custom_call.1} parent=5 // pred_fallthru
        _
      %p343 = scmp.le.s32.totalorder 2, %s16
      // Predicated region
      $region49: #{tpu_custom_call.1} parent=5 // pred_check
        %p344 = pneg %p343
      $region50: #{tpu_custom_call.1} parent=5 // pred_check_branch
        %346 = sbr.rel (%p344) target = $region52
      $region51: #{tpu_custom_call.1} parent=5 // pred_region
        %s347 = ssub.s32 %s16, 2
        // Predicated region
        $region53: #{tpu_custom_call.1} parent=51 // pred_check
          %p348 = pneg %p129
        $region54: #{tpu_custom_call.1} parent=51 // pred_check_branch
          %350 = sbr.rel (%p348) target = $region56
        $region55: #{tpu_custom_call.1} parent=51 // pred_region
          %s351 = sand.u32 %s114, 1
          %s352 = scalar_lea.sflag [#allocation4], %s351
          %s353 = sand.u32 %s114, 1
          %s354 = smul.addr %s353, 8
          %s355 = scalar_lea.vmem [#allocation8], %s354
          %356 = dma.done %s352, 128
        $region56: #{tpu_custom_call.1} parent=51 // pred_fallthru
          _
      $region52: #{tpu_custom_call.1} parent=5 // pred_fallthru
        _
    $region6: #{tpu_custom_call.1} parent=1 // loop_footer
      %s20 = sadd.s32 1, %s16
    $region7: #{tpu_custom_call.1} parent=1 // loop_footer_branch
      %15 = sbr.rel target = $region3
    $region8: #{tpu_custom_call.1} parent=1 // loop_exit
      _
    %357 = vsyncpa [#allocation3], 1
    %s358 = scalar_lea.sflag [#allocation3], 1
    %359 = vsyncpa %s358, 1
    %360 = vsyncpa [#allocation6], 1
    %361 = vsyncpa [#allocation4], 1
    %s362 = scalar_lea.sflag [#allocation4], 1
    %363 = vsyncpa %s362, 1

</llo_original>
